<compile_context>
chip_gen: v7x
topology: tpu7x:2x2x1
jax: 0.10.0
libtpu: 0.0.40
codegen_flags: <defaults>
</compile_context>

<pallas_src>
import functools

import jax
import jax.numpy as jnp
from jax import lax
from jax.experimental import pallas as pl
from jax.experimental.pallas import tpu as pltpu


def _tpu_generation():
    """Best-effort TPU generation (4/5/6/7...); 0 if it cannot be determined."""
    strs = []
    try:
        info = pltpu.get_tpu_info()
        strs.append(str(getattr(info, "chip_version", "")).lower())
    except Exception:
        pass
    try:
        strs.append(jax.devices()[0].device_kind.lower())
    except Exception:
        pass
    for s in strs:
        for g in (7, 6, 5, 4):
            if (f"v{g}" in s) or (f"tpu{g}" in s):
                return g
    return 0


def _ce_s2s_kernel(logits_ref, tgt_ref, loss_ref, acc_ref, *,
                   n_valid_rows, class_chunk, native_math):
    # logits_ref: (TR, C)   native-dtype logits tile (rows = flattened (seq, batch))
    # tgt_ref   : (TR, 1)   int32 class indices for those rows
    # loss_ref  : (1, 1, 1) f32 per-core partial output (sum of NLL over its rows)
    # acc_ref   : (TR, 1)   f32 VMEM scratch accumulating per-row NLL sums
    c = pl.program_id(0)           # core axis (CORE_PARALLEL on v7x, size 1 otherwise)
    j = pl.program_id(1)           # row-tile axis within the core ("arbitrary")
    nj = pl.num_programs(1)

    @pl.when(j == 0)
    def _():
        acc_ref[...] = jnp.zeros_like(acc_ref)

    tr, n_classes = logits_ref.shape
    t = tgt_ref[...]                                   # (TR, 1) int32

    def chunk_update(x_chunk, col_offset, carry):
        """Online-logsumexp update for one class chunk.

        Exact-in-native-dtype max and masked target gather (packed bf16 VALU on
        v6e/v7x); f32 only on the (x - m) -> exp -> sum path.
        """
        m_run, s_run, tg_run = carry
        xn = x_chunk if native_math else x_chunk.astype(jnp.float32)
        m_k = jnp.max(xn, axis=-1, keepdims=True).astype(jnp.float32)     # exact
        col = lax.broadcasted_iota(jnp.int32, xn.shape, 1) + col_offset
        tg_k = jnp.sum(jnp.where(col == t, xn, 0), axis=-1,
                       keepdims=True).astype(jnp.float32)                 # exact
        m_new = jnp.maximum(m_run, m_k)
        e = jnp.exp(xn.astype(jnp.float32) - m_new)     # cast fuses into exp chain
        s_k = jnp.sum(e, axis=-1, keepdims=True)
        s_new = s_run * jnp.exp(m_run - m_new) + s_k
        return m_new, s_new, tg_run + tg_k

    init = (jnp.full((tr, 1), -jnp.inf, jnp.float32),   # running max
            jnp.zeros((tr, 1), jnp.float32),            # running sum of exp
            jnp.zeros((tr, 1), jnp.float32))            # target logit

    ck = min(class_chunk, n_classes)
    if ck >= n_classes:
        # Single pass over the full class axis (small / moderate vocabularies).
        carry = chunk_update(logits_ref[...], 0, init)
    else:
        # Class-axis tiling: full chunks via fori_loop, ragged tail as a static
        # slice so nothing ever reads out of bounds of the VMEM tile.
        nfull = n_classes // ck

        def body(k, carry):
            start = k * ck
            if ck % 128 == 0:
                start = pl.multiple_of(start, 128)      # lane-aligned dynamic slice
            return chunk_update(logits_ref[:, pl.ds(start, ck)], start, carry)

        carry = lax.fori_loop(0, nfull, body, init, unroll=nfull <= 8)
        rem = n_classes - nfull * ck
        if rem:
            carry = chunk_update(logits_ref[:, pl.ds(nfull * ck, rem)],
                                 nfull * ck, carry)

    m_run, s_run, tgt_logit = carry
    lse = m_run + jnp.log(s_run)
    nll = lse - tgt_logit                               # (TR, 1) f32

    # Mask rows beyond the real row count (partial last block / clamped block).
    row = lax.broadcasted_iota(jnp.int32, (tr, 1), 0)
    global_row = (c * nj + j) * tr + row
    acc_ref[...] += jnp.where(global_row < n_valid_rows, nll, 0.0)

    # Cross-lane reduce-to-scalar + output store only in the epilogue.
    @pl.when(j == nj - 1)
    def _():
        loss_ref[0] = jnp.sum(acc_ref[...], axis=(0, 1), keepdims=True)


def cross_entropy_s2s_loss(logits, targets, *, row_tile=None, class_chunk=None):
    """logits: (S, B, C) float (any float dtype); targets: (S, B) int.

    Returns the scalar f32 loss matching CrossEntropyS2SLoss.forward.
    """
    S, B, C = logits.shape
    N = S * B
    itemsize = jnp.dtype(logits.dtype).itemsize
    sub = max(8, 32 // max(1, itemsize))   # sublane multiple for the logits dtype

    gen = _tpu_generation()
    is_v7x = gen >= 7
    # Exact bf16 max / bf16 masked gather only where the VPU packs bf16 (not v5e).
    native_math = (itemsize < 4) and (gen != 5)

    # Class chunk for the in-kernel online logsumexp (bounds f32 temporaries).
    if class_chunk is None:
        class_chunk = C if C <= 1024 else 512
    class_chunk = max(1, min(int(class_chunk), C))

    # Row tile: ~2 MiB of native-dtype logits per buffer on v7x (64 MiB VMEM),
    # ~4 MiB elsewhere (v5e reaches ~85% of HBM roofline with >=512-row tiles).
    if row_tile is None:
        tile_target = (2 if is_v7x else 4) * 1024 * 1024
        row_tile = tile_target // max(1, C * itemsize)
    tr = max(sub, min(int(row_tile), 2048))
    tr = -(-tr // sub) * sub                           # round up to sublane multiple
    tr = min(tr, -(-N // sub) * sub)                   # don't exceed (rounded) rows

    n_tiles = pl.cdiv(N, tr)
    # 2 TensorCores only on v7x (CORE_PARALLEL); v5e/v6e are single-TC chips.
    n_cores = 2 if (is_v7x and n_tiles >= 2) else 1
    tiles_per_core = pl.cdiv(n_tiles, n_cores)
    last_block = n_tiles - 1

    # NO padding copy of the logits: ragged last block handled by the in-kernel
    # row mask; fully-OOB block indices (odd tile count on the 2-core split) are
    # clamped here and their rows masked out by the same predicate.
    x = logits.reshape(N, C)                           # native dtype
    t = targets.reshape(N, 1).astype(jnp.int32)

    def row_block_map(cc, jj):
        return (jnp.minimum(cc * tiles_per_core + jj, last_block), 0)

    kernel = functools.partial(_ce_s2s_kernel, n_valid_rows=N,
                               class_chunk=class_chunk, native_math=native_math)

    # Real working set: 2x double-buffered native tile + ~3x TR*CK*4 f32 temps.
    live_cols = min(C, class_chunk)
    working = 2 * tr * C * itemsize + 3 * tr * live_cols * 4 + 8 * tr * 4
    cap_mib = 96 if gen in (4, 5, 6) else 48           # headroom under v7x's 64 MiB
    vmem_limit = int(min(cap_mib * 2**20, max(32 * 2**20, int(working * 1.25))))

    cost = pl.CostEstimate(
        flops=6 * N * C,
        transcendentals=N * C + N,
        bytes_accessed=N * C * itemsize + N * 4 + n_cores * 4,
    )

    if n_cores == 2:
        dim_sem = (getattr(pltpu, "CORE_PARALLEL", "parallel"), "arbitrary")
    else:
        dim_sem = ("arbitrary", "arbitrary")

    partials = pl.pallas_call(
        kernel,
        out_shape=jax.ShapeDtypeStruct((n_cores, 1, 1), jnp.float32),
        grid_spec=pltpu.PrefetchScalarGridSpec(
            num_scalar_prefetch=0,
            grid=(n_cores, tiles_per_core),
            in_specs=[
                pl.BlockSpec((tr, C), row_block_map),
                pl.BlockSpec((tr, 1), row_block_map),
            ],
            out_specs=pl.BlockSpec((1, 1, 1), lambda cc, jj: (cc, 0, 0)),
            scratch_shapes=[pltpu.VMEM((tr, 1), jnp.float32)],
        ),
        compiler_params=pltpu.CompilerParams(
            dimension_semantics=dim_sem,
            vmem_limit_bytes=vmem_limit,
        ),
        cost_estimate=cost,
    )(x, t)

    # Per-step CrossEntropyLoss uses reduction='mean' over the batch, so the
    # sum over sequence steps equals (sum of all per-row NLL) / B.
    return jnp.sum(partials) / jnp.float32(B)


def _reference_loss(logits, targets):
    # Pure-JAX reference matching torch.nn.CrossEntropyLoss summed over the sequence.
    logp = jax.nn.log_softmax(logits.astype(jnp.float32), axis=-1)       # (S, B, C)
    nll = -jnp.take_along_axis(logp, targets[..., None].astype(jnp.int32),
                               axis=-1)[..., 0]                          # (S, B)
    return jnp.sum(jnp.mean(nll, axis=-1))


if __name__ == "__main__":
    key = jax.random.PRNGKey(0)
    k1, k2, k3, k4 = jax.random.split(key, 4)

    # Test 1: bf16 logits with a ragged row count (N=60, 16-row tiles) ->
    # exercises the un-padded partial-last-block masking and the multi-tile
    # accumulator epilogue (plus the 2-core split / clamp on v7x).
    S, B, C = 15, 4, 32
    logits = jax.random.normal(k1, (S, B, C), dtype=jnp.float32).astype(jnp.bfloat16)
    targets = jax.random.randint(k2, (S, B), 0, C, dtype=jnp.int32)
    loss = jax.block_until_ready(cross_entropy_s2s_loss(logits, targets, row_tile=16))
    ref = _reference_loss(logits, targets)
    assert jnp.allclose(loss, ref, rtol=1e-5, atol=1e-4), (loss, ref)

    # Test 2: wider class axis with a forced 128-class chunk -> exercises the
    # in-kernel online-logsumexp class tiling (fori_loop over 2 full chunks +
    # a static 64-class remainder chunk).
    S2, B2, C2 = 8, 4, 320
    logits2 = jax.random.normal(k3, (S2, B2, C2), dtype=jnp.float32).astype(jnp.bfloat16)
    targets2 = jax.random.randint(k4, (S2, B2), 0, C2, dtype=jnp.int32)
    loss2 = jax.block_until_ready(
        cross_entropy_s2s_loss(logits2, targets2, row_tile=16, class_chunk=128))
    ref2 = _reference_loss(logits2, targets2)
    assert jnp.allclose(loss2, ref2, rtol=1e-5, atol=1e-4), (loss2, ref2)

    print("KERNEL_OK")
</pallas_src>

<mosaic_0001>
module attributes {stable_mosaic.version = 11 : i64} {
  func.func @_ce_s2s_kernel(%arg0: i32, %arg1: i32, %arg2: memref<16x32xbf16, #tpu.memory_space<vmem>>, %arg3: memref<16x1xi32, #tpu.memory_space<vmem>>, %arg4: memref<1x1x1xf32, #tpu.memory_space<vmem>>, %arg5: memref<16x1xf32, #tpu.memory_space<vmem>>) attributes {dimension_semantics = [#tpu.dimension_semantics<arbitrary>, #tpu.dimension_semantics<arbitrary>], iteration_bounds = array<i64: 1, 4>, scalar_prefetch = 0 : i64, scratch_operands = 1 : i64, tpu.core_type = #tpu.core_type<tc>, window_params = [{transform_indices = @transform_0, window_bounds = array<i64: 16, 32>}, {transform_indices = @transform_1, window_bounds = array<i64: 16, 1>}, {transform_indices = @transform_2, window_bounds = array<i64: 1, 1, 1>}]} {
    %c0_i32 = arith.constant 0 : i32
    %0 = arith.cmpi eq, %arg1, %c0_i32 : i32
    %1 = arith.extui %0 : i1 to i32
    %c0_i32_0 = arith.constant 0 : i32
    %2 = arith.cmpi ne, %1, %c0_i32_0 : i32
    scf.if %2 {
      %cst_17 = arith.constant 0.000000e+00 : f32
      %55 = vector.broadcast %cst_17 : f32 to vector<16x1xf32>
      %c0_18 = arith.constant 0 : index
      %c0_19 = arith.constant 0 : index
      %56 = vector.load %arg5[%c0_18, %c0_19] : memref<16x1xf32, #tpu.memory_space<vmem>>, vector<16x1xf32>
      tpu.vector_store %arg5[%c0_18, %c0_19], %55 {strides = array<i32>} : memref<16x1xf32, #tpu.memory_space<vmem>>, vector<16x1xf32>,
    } else {
    }
    %c0 = arith.constant 0 : index
    %c0_1 = arith.constant 0 : index
    %3 = vector.load %arg3[%c0, %c0_1] : memref<16x1xi32, #tpu.memory_space<vmem>>, vector<16x1xi32>
    %cst = arith.constant 0xFF800000 : f32
    %4 = vector.broadcast %cst : f32 to vector<16x1xf32>
    %cst_2 = arith.constant 0.000000e+00 : f32
    %5 = vector.broadcast %cst_2 : f32 to vector<16x1xf32>
    %cst_3 = arith.constant 0.000000e+00 : f32
    %6 = vector.broadcast %cst_3 : f32 to vector<16x1xf32>
    %c0_4 = arith.constant 0 : index
    %c0_5 = arith.constant 0 : index
    %7 = vector.load %arg2[%c0_4, %c0_5] : memref<16x32xbf16, #tpu.memory_space<vmem>>, vector<16x32xbf16>
    %cst_6 = arith.constant dense<0xFF80> : vector<16xbf16>
    %8 = vector.multi_reduction <maximumf>, %7, %cst_6 [1] : vector<16x32xbf16> to vector<16xbf16>
    %9 = vector.shape_cast %8 : vector<16xbf16> to vector<16x1xbf16>
    %10 = arith.extf %9 : vector<16x1xbf16> to vector<16x1xf32>
    %11 = tpu.iota {dimensions = array<i32: 1>} : vector<16x32xi32>
    %c0_i32_7 = arith.constant 0 : i32
    %12 = vector.broadcast %c0_i32_7 : i32 to vector<16x32xi32>
    %13 = arith.addi %11, %12 : vector<16x32xi32>
    %14 = vector.broadcast %3 : vector<16x1xi32> to vector<16x32xi32>
    %15 = arith.cmpi eq, %13, %14 : vector<16x32xi32>
    %c0_i32_8 = arith.constant 0 : i32
    %16 = arith.sitofp %c0_i32_8 : i32 to bf16
    %17 = vector.broadcast %16 : bf16 to vector<16x32xbf16>
    %18 = arith.select %15, %7, %17 : vector<16x32xi1>, vector<16x32xbf16>
    %19 = arith.extf %18 : vector<16x32xbf16> to vector<16x32xf32>
    %cst_9 = arith.constant dense<0.000000e+00> : vector<16xf32>
    %20 = vector.multi_reduction <add>, %19, %cst_9 [1] : vector<16x32xf32> to vector<16xf32>
    %21 = vector.shape_cast %20 : vector<16xf32> to vector<16x1xf32>
    %22 = arith.truncf %21 : vector<16x1xf32> to vector<16x1xbf16>
    %23 = arith.extf %22 : vector<16x1xbf16> to vector<16x1xf32>
    %24 = arith.maximumf %4, %10 : vector<16x1xf32>
    %25 = arith.extf %7 : vector<16x32xbf16> to vector<16x32xf32>
    %26 = vector.broadcast %24 : vector<16x1xf32> to vector<16x32xf32>
    %27 = arith.subf %25, %26 : vector<16x32xf32>
    %28 = math.exp %27 : vector<16x32xf32>
    %cst_10 = arith.constant dense<0.000000e+00> : vector<16xf32>
    %29 = vector.multi_reduction <add>, %28, %cst_10 [1] : vector<16x32xf32> to vector<16xf32>
    %30 = vector.shape_cast %29 : vector<16xf32> to vector<16x1xf32>
    %31 = arith.subf %4, %24 : vector<16x1xf32>
    %32 = math.exp %31 : vector<16x1xf32>
    %33 = arith.mulf %5, %32 : vector<16x1xf32>
    %34 = arith.addf %33, %30 : vector<16x1xf32>
    %35 = arith.addf %6, %23 : vector<16x1xf32>
    %36 = math.log %34 : vector<16x1xf32>
    %37 = arith.addf %24, %36 : vector<16x1xf32>
    %38 = arith.subf %37, %35 : vector<16x1xf32>
    %39 = tpu.iota {dimensions = array<i32: 0>} : vector<16x1xi32>
    %c4_i32 = arith.constant 4 : i32
    %40 = arith.muli %arg0, %c4_i32 : i32
    %41 = arith.addi %40, %arg1 : i32
    %c16_i32 = arith.constant 16 : i32
    %42 = arith.muli %41, %c16_i32 : i32
    %43 = vector.broadcast %42 : i32 to vector<16x1xi32>
    %44 = arith.addi %43, %39 : vector<16x1xi32>
    %c0_11 = arith.constant 0 : index
    %c0_12 = arith.constant 0 : index
    %45 = vector.load %arg5[%c0_11, %c0_12] : memref<16x1xf32, #tpu.memory_space<vmem>>, vector<16x1xf32>
    %c60_i32 = arith.constant 60 : i32
    %46 = vector.broadcast %c60_i32 : i32 to vector<16x1xi32>
    %47 = arith.cmpi slt, %44, %46 : vector<16x1xi32>
    %cst_13 = arith.constant 0.000000e+00 : f32
    %48 = vector.broadcast %cst_13 : f32 to vector<16x1xf32>
    %49 = arith.select %47, %38, %48 : vector<16x1xi1>, vector<16x1xf32>
    %50 = arith.addf %45, %49 : vector<16x1xf32>
    %c0_14 = arith.constant 0 : index
    %c0_15 = arith.constant 0 : index
    %51 = vector.load %arg5[%c0_14, %c0_15] : memref<16x1xf32, #tpu.memory_space<vmem>>, vector<16x1xf32>
    tpu.vector_store %arg5[%c0_14, %c0_15], %50 {strides = array<i32>} : memref<16x1xf32, #tpu.memory_space<vmem>>, vector<16x1xf32>,
    %c3_i32 = arith.constant 3 : i32
    %52 = arith.cmpi eq, %arg1, %c3_i32 : i32
    %53 = arith.extui %52 : i1 to i32
    %c0_i32_16 = arith.constant 0 : i32
    %54 = arith.cmpi ne, %53, %c0_i32_16 : i32
    scf.if %54 {
      %c0_17 = arith.constant 0 : index
      %c0_18 = arith.constant 0 : index
      %55 = vector.load %arg5[%c0_17, %c0_18] : memref<16x1xf32, #tpu.memory_space<vmem>>, vector<16x1xf32>
      %56 = vector.shape_cast %55 : vector<16x1xf32> to vector<1x16x1xf32>
      %cst_19 = arith.constant dense<0.000000e+00> : vector<1xf32>
      %57 = vector.multi_reduction <add>, %56, %cst_19 [1, 2] : vector<1x16x1xf32> to vector<1xf32>
      %58 = vector.shape_cast %57 : vector<1xf32> to vector<1x1x1xf32>
      %59 = vector.extract %58[0, 0, 0] : f32 from vector<1x1x1xf32>
      %60 = vector.broadcast %59 : f32 to vector<1x1xf32>
      %c0_20 = arith.constant 0 : index
      %c0_21 = arith.constant 0 : index
      %c0_22 = arith.constant 0 : index
      %61 = vector.load %arg4[%c0_20, %c0_21, %c0_22] : memref<1x1x1xf32, #tpu.memory_space<vmem>>, vector<1x1x1xf32>
      %62 = vector.shape_cast %61 : vector<1x1x1xf32> to vector<1x1xf32>
      %63 = vector.shape_cast %60 : vector<1x1xf32> to vector<1x1x1xf32>
      tpu.vector_store %arg4[%c0_20, %c0_21, %c0_22], %63 {strides = array<i32>} : memref<1x1x1xf32, #tpu.memory_space<vmem>>, vector<1x1x1xf32>,
    } else {
    }
    return
  }
  func.func @transform_0(%arg0: i32, %arg1: i32) -> (i32, i32) {
    %c4_i32 = arith.constant 4 : i32
    %0 = arith.muli %arg0, %c4_i32 : i32
    %1 = arith.addi %0, %arg1 : i32
    %c3_i32 = arith.constant 3 : i32
    %2 = arith.minsi %1, %c3_i32 : i32
    %c0_i32 = arith.constant 0 : i32
    %c0_i32_0 = arith.constant 0 : i32
    return %2, %c0_i32 : i32, i32
  }
  func.func @transform_1(%arg0: i32, %arg1: i32) -> (i32, i32) {
    %c4_i32 = arith.constant 4 : i32
    %0 = arith.muli %arg0, %c4_i32 : i32
    %1 = arith.addi %0, %arg1 : i32
    %c3_i32 = arith.constant 3 : i32
    %2 = arith.minsi %1, %c3_i32 : i32
    %c0_i32 = arith.constant 0 : i32
    %c0_i32_0 = arith.constant 0 : i32
    return %2, %c0_i32 : i32, i32
  }
  func.func @transform_2(%arg0: i32, %arg1: i32) -> (i32, i32, i32) {
    %c0_i32 = arith.constant 0 : i32
    %c0_i32_0 = arith.constant 0 : i32
    %c0_i32_1 = arith.constant 0 : i32
    return %arg0, %c0_i32, %c0_i32_0 : i32, i32, i32
  }
}

</mosaic_0001>

<llo_original>
// kernel: tpu_custom_call.1
$region0: #{tpu_custom_call.1}
  #allocation0 [shape = 'u32[]', space=smem, size = 0x4, offset = 0x4, fixed_abs, tag = 'smem constant byte address 0x4 - core index']
  #allocation1 [shape = 'u32[144,128]{1,0:T(1,128)}', space=vmem, size = 0x12000, scoped, tag = 'internal scratch']
  #allocation2 [shape = 'f32[16,1]{1,0:T(8,128)}', space=vmem, size = 0x2000, scoped, tag = 'scratch operand']
  %s0 = inlined_call_operand.vmem [shape: bf16[60,32], index: 0, kind: input, shape index: {}]
  %s1 = inlined_call_operand.vmem [shape: s32[60,1], index: 1, kind: input, shape index: {}]
  %s2 = inlined_call_operand.hbm [shape: f32[1,1,1], index: 2, kind: output, shape index: {}]
  %s3 = sld [smem:[#allocation0]]
  $region49: #{tpu_custom_call.1} parent=0
    _
  %s5 = ssub.s32 1, %s3
  %s6 = scalar_select 0, %s5, %s3
  $region1: #{tpu_custom_call.1} parent=0
    #allocation3 [shape = 'u8[512]{0}', space=vmem, size = 0x400, scoped, tag = 'output window, operand 0, single buffered']
    #allocation4 [shape = 's32[2]{0}', space=sflag, size = 0x8, scoped, tag = 'scoped memory for tpu_custom_call.1']
    %7 = vsyncpa [#allocation4], 0
    loop: start=0, step=1, limit=6
    $region2: #{tpu_custom_call.1} parent=1 // loop_pre_header
      _
    $region3: #{tpu_custom_call.1} parent=1 // loop_header
      %s9 = sphi 0, %s13
      %p10 = scmp.ge.s32.totalorder %s9, 6
      %s16 = sphi 0, %s28
      %s17 = sphi 0, %s24
      %s18 = sphi 0, %s16
      %s19 = sphi 0, %s17
      %s20 = sphi 0, %s18
      %s21 = sphi 0, %s19
      %s39 = sphi 0, %s41
      %s42 = sphi 0, %s39
      %s43 = sphi 0, %s42
      %s59 = sphi 0, %s43
      %s73 = sphi 0, %s75
      %s76 = sphi 0, %s73
      %s77 = sphi 0, %s76
      %s93 = sphi 0, %s77
      %s99 = sphi 0, %s101
      %s102 = sphi 0, %s99
      %s103 = sphi 0, %s102
      %s119 = sphi 0, %s103
    $region4: #{tpu_custom_call.1} parent=1 // loop_header_branch
      %12 = sbr.rel (%p10) target = $region8
    $region5: #{tpu_custom_call.1} parent=1 // loop_body
      %s14 = ssub.s32 %s9, 1
      %s15 = ssub.s32 %s9, 2
      %s22 = sadd.s32 1, %s17
      %p23 = scmp.ge.s32.totalorder %s22, 4
      %s24 = scalar_select %p23, 0, %s22
      %s25 = sadd.s32 1, %s16
      %s26 = scalar_select %p23, %s25, %s16
      %p27 = scmp.ge.s32.totalorder %s26, 1
      %s28 = scalar_select %p27, 0, %s26
      %s29 = smul.u32 %s16, 4
      %s30 = sadd.s32 %s29, %s17
      %p31 = scmp.lt.s32.totalorder %s30, 3
      %s32 = scalar_select %p31, %s30, 3
      %s33 = smul.u32 %s28, 4
      %s34 = sadd.s32 %s33, %s24
      %p35 = scmp.lt.s32.totalorder %s34, 3
      %s36 = scalar_select %p35, %s34, 3
      %s37 = ssub.s32 %s32, %s36
      %p38 = scmp.eq.s32.totalorder %s37, 0
      %s40 = sadd.s32 %s39, 1
      %s41 = scalar_select %p38, %s39, %s40
      %p44 = pneg %p38
      %p45 = scmp.eq.s32.totalorder %s9, 3
      %p46 = por %p44, %p45
      %p47 = scmp.ne.s32.totalorder %s39, %s42
      %p48 = scmp.eq.s32.totalorder %s9, 0
      %p49 = por %p47, %p48
      %p50 = scmp.ne.s32.totalorder %s39, %s42
      %p51 = scmp.eq.s32.totalorder %s14, 3
      %p52 = por %p50, %p51
      %p53 = scmp.ne.s32.totalorder %s42, %s43
      %p54 = scmp.eq.s32.totalorder %s14, 0
      %p55 = por %p53, %p54
      %p56 = scmp.ne.s32.totalorder %s42, %s43
      %p57 = scmp.eq.s32.totalorder %s15, 3
      %p58 = por %p56, %p57
      %p60 = scmp.ne.s32.totalorder %s43, %s59
      %p61 = scmp.eq.s32.totalorder %s15, 0
      %p62 = por %p60, %p61
      %s63 = smul.u32 %s16, 4
      %s64 = sadd.s32 %s63, %s17
      %p65 = scmp.lt.s32.totalorder %s64, 3
      %s66 = scalar_select %p65, %s64, 3
      %s67 = smul.u32 %s28, 4
      %s68 = sadd.s32 %s67, %s24
      %p69 = scmp.lt.s32.totalorder %s68, 3
      %s70 = scalar_select %p69, %s68, 3
      %s71 = ssub.s32 %s66, %s70
      %p72 = scmp.eq.s32.totalorder %s71, 0
      %s74 = sadd.s32 %s73, 1
      %s75 = scalar_select %p72, %s73, %s74
      %p78 = pneg %p72
      %p79 = scmp.eq.s32.totalorder %s9, 3
      %p80 = por %p78, %p79
      %p81 = scmp.ne.s32.totalorder %s73, %s76
      %p82 = scmp.eq.s32.totalorder %s9, 0
      %p83 = por %p81, %p82
      %p84 = scmp.ne.s32.totalorder %s73, %s76
      %p85 = scmp.eq.s32.totalorder %s14, 3
      %p86 = por %p84, %p85
      %p87 = scmp.ne.s32.totalorder %s76, %s77
      %p88 = scmp.eq.s32.totalorder %s14, 0
      %p89 = por %p87, %p88
      %p90 = scmp.ne.s32.totalorder %s76, %s77
      %p91 = scmp.eq.s32.totalorder %s15, 3
      %p92 = por %p90, %p91
      %p94 = scmp.ne.s32.totalorder %s77, %s93
      %p95 = scmp.eq.s32.totalorder %s15, 0
      %p96 = por %p94, %p95
      %s97 = ssub.s32 %s16, %s28
      %p98 = scmp.eq.s32.totalorder %s97, 0
      %s100 = sadd.s32 %s99, 1
      %s101 = scalar_select %p98, %s99, %s100
      %p104 = pneg %p98
      %p105 = scmp.eq.s32.totalorder %s9, 3
      %p106 = por %p104, %p105
      %p107 = scmp.ne.s32.totalorder %s99, %s102
      %p108 = scmp.eq.s32.totalorder %s9, 0
      %p109 = por %p107, %p108
      %p110 = scmp.ne.s32.totalorder %s99, %s102
      %p111 = scmp.eq.s32.totalorder %s14, 3
      %p112 = por %p110, %p111
      %p113 = scmp.ne.s32.totalorder %s102, %s103
      %p114 = scmp.eq.s32.totalorder %s14, 0
      %p115 = por %p113, %p114
      %p116 = scmp.ne.s32.totalorder %s102, %s103
      %p117 = scmp.eq.s32.totalorder %s15, 3
      %p118 = por %p116, %p117
      %p120 = scmp.ne.s32.totalorder %s103, %s119
      %p121 = scmp.eq.s32.totalorder %s15, 0
      %p122 = por %p120, %p121
      %p123 = scmp.le.s32.totalorder 1, %s9
      %p124 = scmp.lt.s32.totalorder %s9, 5
      %p125 = pnand %p123, %p124
      %p126 = pneg %p125
      // Predicated region
      $region9: #{tpu_custom_call.1} parent=5 // pred_check
        _
      $region10: #{tpu_custom_call.1} parent=5 // pred_check_branch
        %128 = sbr.rel (%p125) target = $region12
      $region11: #{tpu_custom_call.1} parent=5 // pred_region
        %s129 = ssub.s32 %s9, 1
      $region12: #{tpu_custom_call.1} parent=5 // pred_fallthru
        _
      %p130 = scmp.lt.s32.totalorder %s9, 4
      // Predicated region
      $region13: #{tpu_custom_call.1} parent=5 // pred_check
        %p131 = pneg %p130
      $region14: #{tpu_custom_call.1} parent=5 // pred_check_branch
        %133 = sbr.rel (%p131) target = $region16
      $region15: #{tpu_custom_call.1} parent=5 // pred_region
        // Predicated region
        $region17: #{tpu_custom_call.1} parent=15 // pred_check
          %p134 = pneg %p49
        $region18: #{tpu_custom_call.1} parent=15 // pred_check_branch
          %136 = sbr.rel (%p134) target = $region20
        $region19: #{tpu_custom_call.1} parent=15 // pred_region
          %s137 = smul.u32 %s16, 4
          %s138 = sadd.s32 %s137, %s17
          %p139 = scmp.lt.s32.totalorder %s138, 3
          %s140 = scalar_select %p139, %s138, 3
          %s141 = smul.u32 2, %s140
          %p142 = scmp.lt.s32.totalorder %s141, 7
          %s143 = scalar_select %p142, %s141, 7
          %s144 = smul.addr %s143, 4
          %s145 = scalar_lea.vmem %s0, %s144
          %s146 = smul.u32 %s16, 4
          %s147 = sadd.s32 %s146, %s17
          %p148 = scmp.lt.s32.totalorder %s147, 3
          %s149 = scalar_select %p148, %s147, 3
          %s150 = smul.u32 2, %s149
        $region20: #{tpu_custom_call.1} parent=15 // pred_fallthru
          _
        // Predicated region
        $region21: #{tpu_custom_call.1} parent=15 // pred_check
          %p151 = pneg %p83
        $region22: #{tpu_custom_call.1} parent=15 // pred_check_branch
          %153 = sbr.rel (%p151) target = $region24
        $region23: #{tpu_custom_call.1} parent=15 // pred_region
          %s154 = smul.u32 %s16, 4
          %s155 = sadd.s32 %s154, %s17
          %p156 = scmp.lt.s32.totalorder %s155, 3
          %s157 = scalar_select %p156, %s155, 3
          %s158 = smul.u32 2, %s157
          %p159 = scmp.lt.s32.totalorder %s158, 7
          %s160 = scalar_select %p159, %s158, 7
          %s161 = smul.addr %s160, 8
          %s162 = scalar_lea.vmem %s1, %s161
          %s163 = smul.u32 %s16, 4
          %s164 = sadd.s32 %s163, %s17
          %p165 = scmp.lt.s32.totalorder %s164, 3
          %s166 = scalar_select %p165, %s164, 3
          %s167 = smul.u32 2, %s166
        $region24: #{tpu_custom_call.1} parent=15 // pred_fallthru
          _
      $region16: #{tpu_custom_call.1} parent=5 // pred_fallthru
        _
      %p168 = scmp.le.s32.totalorder 1, %s9
      %p169 = scmp.lt.s32.totalorder %s9, 5
      %p170 = pnand %p168, %p169
      %p171 = pneg %p170
      // Predicated region
      $region25: #{tpu_custom_call.1} parent=5 // pred_check
        _
      $region26: #{tpu_custom_call.1} parent=5 // pred_check_branch
        %173 = sbr.rel (%p170) target = $region28
      $region27: #{tpu_custom_call.1} parent=5 // pred_region
        %s174 = ssub.s32 %s9, 1
        %s175 = smul.u32 %s18, 4
        %s176 = sadd.s32 %s175, %s19
        %p177 = scmp.lt.s32.totalorder %s176, 3
        %s178 = scalar_select %p177, %s176, 3
        %s179 = smul.u32 2, %s178
        %p180 = scmp.lt.s32.totalorder %s179, 7
        %s181 = scalar_select %p180, %s179, 7
        %s182 = smul.addr %s181, 4
        %s183 = scalar_lea.vmem %s0, %s182
        %p184 = pneg %p55
        %p185 = pneg %p52
        %s186 = smul.u32 %s18, 4
        %s187 = sadd.s32 %s186, %s19
        %p188 = scmp.lt.s32.totalorder %s187, 3
        %s189 = scalar_select %p188, %s187, 3
        %s190 = smul.u32 2, %s189
        %p191 = scmp.lt.s32.totalorder %s190, 7
        %s192 = scalar_select %p191, %s190, 7
        %s193 = smul.addr %s192, 8
        %s194 = scalar_lea.vmem %s1, %s193
        %p195 = pneg %p89
        %p196 = pneg %p86
        %p197 = pneg %p115
        %p198 = pneg %p112
        %s199 = smul.u32 %s18, 4
        %s200 = sadd.s32 %s199, %s19
        %p201 = scmp.lt.s32.totalorder %s200, 3
        %s202 = scalar_select %p201, %s200, 3
        %s203 = smul.u32 2, %s202
        %p204 = scmp.lt.s32.totalorder %s203, 7
        %s205 = scalar_select %p204, %s203, 7
        %s206 = smul.addr %s205, 4
        %s207 = scalar_lea.vmem %s0, %s206
        %s208 = smul.u32 %s18, 4
        %s209 = sadd.s32 %s208, %s19
        %p210 = scmp.lt.s32.totalorder %s209, 3
        %s211 = scalar_select %p210, %s209, 3
        %s212 = smul.u32 2, %s211
        %s213 = smul.u32 %s18, 4
        %s214 = sadd.s32 %s213, %s19
        %p215 = scmp.lt.s32.totalorder %s214, 3
        %s216 = scalar_select %p215, %s214, 3
        %s217 = smul.u32 2, %s216
        %p218 = scmp.lt.s32.totalorder %s217, 7
        %s219 = scalar_select %p218, %s217, 7
        %s220 = smul.addr %s219, 8
        %s221 = scalar_lea.vmem %s1, %s220
        %s222 = smul.u32 %s18, 4
        %s223 = sadd.s32 %s222, %s19
        %p224 = scmp.lt.s32.totalorder %s223, 3
        %s225 = scalar_select %p224, %s223, 3
        %s226 = smul.u32 2, %s225
        %p229 = scmp.eq.s32.totalorder %s19, 0
        // Predicated region
        $region29: #{tpu_custom_call.1} parent=27 // pred_check
          %p230 = pneg %p229
        $region30: #{tpu_custom_call.1} parent=27 // pred_check_branch
          %232 = sbr.rel (%p230) target = $region32
        $region31: #{tpu_custom_call.1} parent=27 // pred_region
          %vm233 = vcmask 7168
          %234 = vst.msk [vmem:[#allocation2] sm:$0xff] %vm233, 0.0
          %235 = vst.msk [vmem:[#allocation2 + $0x8] sm:$0xff] %vm233, 0.0
        $region32: #{tpu_custom_call.1} parent=27 // pred_fallthru
          _
        %v236 = vld [vmem:[%s221] sm:$0xff]
        %v237 = vld [vmem:[%s221 + $0x8] sm:$0xff]
        %v238 = vld [vmem:[%s207] sm:$0xf]
        %v239 = vld [vmem:[%s207 + $0x4] sm:$0xf]
        %v242 = vunpack.c.l.b16 %v238
        %v243 = vunpack.c.l.b16 %v239
        %v244 = vpack.c.b16 %v243, %v242
        %vm245 = vcmask 261120
        %v248 = vsel %vm245, %v244, 4286644096
        %250 = vmax.xlane.bf16.xlu0 %v248
        %v251 = vpop.xlane.xlu0 %250
        %v252 = vunpack.c.l.bf16 %v251
        %v253 = vunpack.c.h.bf16 %v251
        %v254 = vlaneseq
        %v255 = vand.u32 %v254, 127
        %256 = vset.pattern.permute.xlu0 0
        %257 = vperm.xlu0 %256, %v236
        %v258 = vpop.permute.xlu0 %257
        %259 = vset.pattern.permute.xlu0 0
        %260 = vperm.xlu0 %259, %v237
        %v261 = vpop.permute.xlu0 %260
        %vm262 = vcmp.eq.s32.totalorder %v255, %v258
        %vm263 = vcmp.eq.s32.totalorder %v255, %v261
        %vm264 = vmpackc.low %vm262, %vm262
        %vm265 = vmpackc.low %vm263, %vm263
        %v266 = vsel %vm264, %v238, 0
        %v267 = vsel %vm265, %v239, 0
        %v268 = vunpack.c.l.bf16 %v266
        %v269 = vunpack.c.l.bf16 %v267
        %v270 = vsel %vm245, %v268, 0.0
        %271 = vadd.xlane.f32.xlu0 %v270
        %v272 = vpop.xlane.xlu0 %271
        %v273 = vsel %vm245, %v269, 0.0
        %274 = vadd.xlane.f32.xlu0 %v273
        %v275 = vpop.xlane.xlu0 %274
        %v276 = vpack.c.bf16 %v275, %v272
        %v277 = vunpack.c.l.bf16 %v276
        %v278 = vunpack.c.h.bf16 %v276
        %v279 = vunpack.c.l.bf16 %v238
        %v280 = vunpack.c.l.bf16 %v239
        %v281 = vsub.f32 %v279, %v252
        %v282 = vsub.f32 %v280, %v253
        %v283 = vmul.f32 %v281, 1.442695
        %v284 = vpow.pop %v283
        %v285 = vmul.f32 %v282, 1.442695
        %v286 = vpow.pop %v285
        %v287 = vsel %vm245, %v284, 0.0
        %288 = vadd.xlane.f32.xlu0 %v287
        %v289 = vpop.xlane.xlu0 %288
        %v290 = vsel %vm245, %v286, 0.0
        %291 = vadd.xlane.f32.xlu0 %v290
        %v292 = vpop.xlane.xlu0 %291
        %v293 = vsub.f32 -inf, %v252
        %v294 = vsub.f32 -inf, %v253
        %v295 = vmul.f32 %v293, 1.442695
        %v296 = vpow.pop %v295
        %v297 = vmul.f32 %v294, 1.442695
        %v298 = vpow.pop %v297
        %v299 = vmul.f32 %v296, 0.0
        %v300 = vmul.f32 %v298, 0.0
        %v301 = vadd.f32 %v299, %v289
        %v302 = vadd.f32 %v300, %v292
        %v303 = vadd.f32 %v277, 0.0
        %v304 = vadd.f32 %v278, 0.0
        %v305 = vlog2.pop %v301
        %v306 = vmul.f32 %v305, 0.6931472
        %v307 = vlog2.pop %v302
        %v308 = vmul.f32 %v307, 0.6931472
        %v309 = vadd.f32 %v252, %v306
        %v310 = vadd.f32 %v253, %v308
        %v311 = vsub.f32 %v309, %v303
        %v312 = vsub.f32 %v310, %v304
        %v313 = vlaneseq
        %v314 = vshrl.u32 %v313, 7
        %v315 = vadd.s32 %v314, 8
        %s316 = smul.u32 %s18, 4
        %s317 = sadd.s32 %s316, %s19
        %s318 = smul.u32 %s317, 16
        %v319 = vstv %s318
        %v320 = vadd.s32 %v319, %v314
        %v321 = vadd.s32 %v319, %v315
        %v322 = vld [vmem:[#allocation2] sm:$0xff]
        %v323 = vld [vmem:[#allocation2 + $0x8] sm:$0xff]
        %vm324 = vcmp.lt.s32.totalorder %v320, 60
        %vm325 = vcmp.lt.s32.totalorder %v321, 60
        %v326 = vsel %vm324, %v311, 0.0
        %v327 = vsel %vm325, %v312, 0.0
        %v328 = vadd.f32 %v322, %v326
        %v329 = vadd.f32 %v323, %v327
        %vm330 = vcmask 7168
        %331 = vst.msk [vmem:[#allocation2] sm:$0xff] %vm330, %v328
        %332 = vst.msk [vmem:[#allocation2 + $0x8] sm:$0xff] %vm330, %v329
        %p333 = scmp.eq.s32.totalorder %s19, 3
        // Predicated region
        $region33: #{tpu_custom_call.1} parent=27 // pred_check
          %p334 = pneg %p333
        $region34: #{tpu_custom_call.1} parent=27 // pred_check_branch
          %336 = sbr.rel (%p334) target = $region36
        $region35: #{tpu_custom_call.1} parent=27 // pred_region
          %v337 = vld [vmem:[#allocation2] sm:$0xff]
          %v338 = vld [vmem:[#allocation2 + $0x8] sm:$0xff]
          %v339 = vsel %vm330, %v337, 0.0
          %v340 = vsel %vm330, %v338, 0.0
          %v341 = vadd.f32 %v339, %v340
          %342 = vadd.xlane.f32.xlu0 %v341
          %v343 = vpop.xlane.xlu0 %342
          %v344 = vrot.slane %v343, 4
          %v345 = vadd.f32 %v343, %v344
          %v346 = vrot.slane %v345, 2
          %v347 = vadd.f32 %v345, %v346
          %v348 = vrot.slane %v347, 1
          %v349 = vadd.f32 %v347, %v348
          %s350 = vtos %v349
          %v351 = vstv %s350
          %vm352 = vcmask 0
          %353 = vst.msk [vmem:[#allocation3] sm:$0x1] %vm352, %v351
        $region36: #{tpu_custom_call.1} parent=27 // pred_fallthru
          _
        // Predicated region
        $region37: #{tpu_custom_call.1} parent=27 // pred_check
          %p354 = pneg %p112
        $region38: #{tpu_custom_call.1} parent=27 // pred_check_branch
          %356 = sbr.rel (%p354) target = $region40
        $region39: #{tpu_custom_call.1} parent=27 // pred_region
          %s358 = ssub.s32 16, 16
          %359 = vsyncadd [#allocation4], %s358
          %s360 = smul.addr %s18, 16
          %s361 = scalar_lea.hbm %s2, %s360
          %s363 = sshll.u32 [#allocation3], 4
          %s364 = int_to_ptr.vmem [resolvable:$true] %s363
          %366 = dma.vmem_to_hbm [thread:$0]  %s364, 16, %s361, [#allocation4]
        $region40: #{tpu_custom_call.1} parent=27 // pred_fallthru
          _
        // Predicated region
        $region41: #{tpu_custom_call.1} parent=27 // pred_check
          %p367 = pneg %p112
        $region42: #{tpu_custom_call.1} parent=27 // pred_check_branch
          %369 = sbr.rel (%p367) target = $region44
        $region43: #{tpu_custom_call.1} parent=27 // pred_region
          %370 = dma.done [#allocation4], 16
        $region44: #{tpu_custom_call.1} parent=27 // pred_fallthru
          _
      $region28: #{tpu_custom_call.1} parent=5 // pred_fallthru
        _
      %p371 = scmp.le.s32.totalorder 2, %s9
      // Predicated region
      $region45: #{tpu_custom_call.1} parent=5 // pred_check
        %p372 = pneg %p371
      $region46: #{tpu_custom_call.1} parent=5 // pred_check_branch
        %374 = sbr.rel (%p372) target = $region48
      $region47: #{tpu_custom_call.1} parent=5 // pred_region
        %s375 = ssub.s32 %s9, 2
      $region48: #{tpu_custom_call.1} parent=5 // pred_fallthru
        _
    $region6: #{tpu_custom_call.1} parent=1 // loop_footer
      %s13 = sadd.s32 1, %s9
    $region7: #{tpu_custom_call.1} parent=1 // loop_footer_branch
      %8 = sbr.rel target = $region3
    $region8: #{tpu_custom_call.1} parent=1 // loop_exit
      _
    %376 = vsyncpa [#allocation4], 1
    %s377 = scalar_lea.sflag [#allocation4], 1
    %378 = vsyncpa %s377, 1

</llo_original>
